<compile_context>
chip_gen: v5e
topology: v5e:2x2
jax: 0.10.0
libtpu: 0.0.40
codegen_flags: <defaults>
</compile_context>

<pallas_src>
import jax
import jax.numpy as jnp
from jax.experimental import pallas as pl
from jax.experimental.pallas import tpu as pltpu

_LANE = 128


# ---------------------------------------------------------------------------
# Pallas kernel: fused product over all leaves of the AND tree.
#   mask_ref: (C,) int32 in SMEM (scalar prefetch), 1 = marginalized leaf
#   vals_ref: (C, TB) f32 VMEM block, batch on lanes
#   o_ref:    (1, TB) f32 VMEM block (lane-dense store)
# ---------------------------------------------------------------------------
def _fused_and_kernel(mask_ref, vals_ref, o_ref):
    c_total, tb = vals_ref.shape
    acc = jnp.ones((1, tb), dtype=jnp.float32)
    for c in range(c_total):  # static unroll: C-1 full-lane VPU multiplies
        row = vals_ref[pl.ds(c, 1), :]                 # (1, TB)
        mf = mask_ref[c].astype(jnp.float32)           # scalar 0/1 from SMEM
        acc = acc * (row * (1.0 - mf) + mf)            # marginalized -> 1.0
    o_ref[...] = acc


@jax.jit
def _fused_and_prod(x, idx, mask):
    """x: (B, D); idx: (C,) int32 leaf variable indices; mask: (C,) int32.
    Returns (B, 1) product over all leaves (marginalized leaves act as 1.0)."""
    B, _ = x.shape
    C = idx.shape[0]

    # Gather leaf columns and put batch on lanes: (C, B).  Plain-XLA glue
    # (one fused gather+transpose); the hot reduction runs in the kernel.
    vals = jnp.take(x, idx, axis=1).astype(jnp.float32).T

    # Lane-aligned batch tiling.  TB is a multiple of 128 and the per-block
    # VMEM footprint (double-buffered input + output) stays far under the
    # v7x 32 MiB scoped default (also fine on v5e/v6e).
    b_pad128 = pl.cdiv(B, _LANE) * _LANE
    bytes_cap = 8 * 1024 * 1024                       # conservative per-block cap
    tb_cap = max(_LANE, (bytes_cap // (8 * (C + 1))) // _LANE * _LANE)
    tb = min(b_pad128, 1024, tb_cap)
    b_pad = pl.cdiv(B, tb) * tb

    vals = jnp.pad(vals, ((0, 0), (0, b_pad - B)), constant_values=1.0)

    out = pl.pallas_call(
        _fused_and_kernel,
        out_shape=jax.ShapeDtypeStruct((1, b_pad), jnp.float32),
        grid_spec=pltpu.PrefetchScalarGridSpec(
            num_scalar_prefetch=1,
            grid=(b_pad // tb,),
            in_specs=[pl.BlockSpec((C, tb), lambda i, m: (0, i))],
            out_specs=pl.BlockSpec((1, tb), lambda i, m: (0, i)),
        ),
        compiler_params=pltpu.CompilerParams(
            dimension_semantics=("parallel",),
        ),
    )(mask, vals)

    return out[0, :B].reshape(B, 1).astype(x.dtype)


# ---------------------------------------------------------------------------
# Recursive node structure mirroring the PyTorch module hierarchy.
# ---------------------------------------------------------------------------
class LeafNode:
    """Selects variable `idx` from x (shape (B, D)) -> (B, 1).
    If `idx` is marginalized, it contributes 1.0 (neutral for AND)."""

    def __init__(self, idx: int):
        self.idx = idx

    def __str__(self):
        return f"x{self.idx}"

    def collect_leaf_indices(self):
        return [self.idx]

    def forward(self, x, marginalized_variables=None):
        out = x[:, self.idx : self.idx + 1]
        if marginalized_variables is not None and self.idx in marginalized_variables:
            out = jnp.ones_like(out)
        return out


class RecursiveANDNode:
    """AND gate: product over child outputs (dim=1, keepdim=True).

    forward() flattens its subtree into the list of leaf variable indices and
    runs ONE fused Pallas kernel; this is exactly equivalent to the nested
    cat+prod of the PyTorch module because the product is associative and
    marginalized leaves output 1.0."""

    def __init__(self, children_nodes):
        self.children_nodes = list(children_nodes)

    def __str__(self):
        if len(self.children_nodes) == 0:
            return "()"
        return "(" + " ∧ ".join(str(c) for c in self.children_nodes) + ")"

    def collect_leaf_indices(self):
        out = []
        for c in self.children_nodes:
            out.extend(c.collect_leaf_indices())
        return out

    def forward(self, x, marginalized_variables=None):
        leaf_idx = self.collect_leaf_indices()
        B = x.shape[0]
        if len(leaf_idx) == 0:
            # torch.cat([]) would crash; define empty AND as the neutral 1.0.
            return jnp.ones((B, 1), dtype=x.dtype)
        idx = jnp.asarray(leaf_idx, dtype=jnp.int32)
        marg = marginalized_variables if marginalized_variables is not None else set()
        mask = jnp.asarray(
            [1 if i in marg else 0 for i in leaf_idx], dtype=jnp.int32
        )
        return _fused_and_prod(x, idx, mask)


# ---------------------------------------------------------------------------
# Main: build a small recursive structure, run, check against pure-JAX ref.
# ---------------------------------------------------------------------------
if __name__ == "__main__":
    key = jax.random.PRNGKey(0)
    B, D = 8, 4  # batch=8, 4 "soft boolean" variables in [0, 1]
    x = jax.random.uniform(key, (B, D), dtype=jnp.float32)

    # node = (x0 ∧ x1) ∧ (x2 ∧ x3)
    inner_a = RecursiveANDNode([LeafNode(0), LeafNode(1)])
    inner_b = RecursiveANDNode([LeafNode(2), LeafNode(3)])
    root = RecursiveANDNode([inner_a, inner_b])

    out = jax.block_until_ready(root.forward(x))

    # Pure-JAX reference of the same recursive semantics.
    ref = jnp.prod(
        jnp.concatenate(
            [
                jnp.prod(x[:, 0:2], axis=1, keepdims=True),
                jnp.prod(x[:, 2:4], axis=1, keepdims=True),
            ],
            axis=1,
        ),
        axis=1,
        keepdims=True,
    )
    assert out.shape == (B, 1), out.shape
    assert jnp.allclose(out, ref, atol=1e-6, rtol=1e-5), (out, ref)

    # Marginalization path (folded into the kernel via the SMEM mask).
    out_m = jax.block_until_ready(root.forward(x, marginalized_variables={1, 3}))
    ref_m = x[:, 0:1] * x[:, 2:3]
    assert jnp.allclose(out_m, ref_m, atol=1e-6, rtol=1e-5)

    # Exercise lane padding (B % 128 != 0) and a multi-tile grid (B > TB).
    for B2 in (300, 2176):
        x2 = jax.random.uniform(jax.random.PRNGKey(1), (B2, D), dtype=jnp.float32)
        out2 = jax.block_until_ready(root.forward(x2))
        ref2 = jnp.prod(x2, axis=1, keepdims=True)
        assert out2.shape == (B2, 1), out2.shape
        assert jnp.allclose(out2, ref2, atol=1e-6, rtol=1e-5)

    print("KERNEL_OK")
</pallas_src>

<mosaic_0001>
module attributes {stable_mosaic.version = 11 : i64} {
  func.func @_fused_and_kernel(%arg0: i32, %arg1: memref<4xi32, #tpu.memory_space<smem>>, %arg2: memref<4x128xf32, #tpu.memory_space<vmem>>, %arg3: memref<1x128xf32, #tpu.memory_space<vmem>>) attributes {dimension_semantics = [#tpu.dimension_semantics<parallel>], iteration_bounds = array<i64: 1>, scalar_prefetch = 1 : i64, scratch_operands = 0 : i64, tpu.core_type = #tpu.core_type<tc>, window_params = [{transform_indices = @transform_0, window_bounds = array<i64: 4, 128>}, {transform_indices = @transform_1, window_bounds = array<i64: 1, 128>}]} {
    %cst = arith.constant 1.000000e+00 : f32
    %0 = vector.broadcast %cst : f32 to vector<1x128xf32>
    %c0 = arith.constant 0 : index
    %c0_0 = arith.constant 0 : index
    %1 = vector.load %arg2[%c0, %c0_0] : memref<4x128xf32, #tpu.memory_space<vmem>>, vector<1x128xf32>
    %c0_1 = arith.constant 0 : index
    %2 = memref.load %arg1[%c0_1] : memref<4xi32, #tpu.memory_space<smem>>
    %3 = arith.sitofp %2 : i32 to f32
    %cst_2 = arith.constant 1.000000e+00 : f32
    %4 = arith.subf %cst_2, %3 : f32
    %5 = vector.broadcast %4 : f32 to vector<1x128xf32>
    %6 = arith.mulf %1, %5 : vector<1x128xf32>
    %7 = vector.broadcast %3 : f32 to vector<1x128xf32>
    %8 = arith.addf %6, %7 : vector<1x128xf32>
    %9 = arith.mulf %0, %8 : vector<1x128xf32>
    %c1 = arith.constant 1 : index
    %c0_3 = arith.constant 0 : index
    %10 = vector.load %arg2[%c1, %c0_3] : memref<4x128xf32, #tpu.memory_space<vmem>>, vector<1x128xf32>
    %c1_4 = arith.constant 1 : index
    %11 = memref.load %arg1[%c1_4] : memref<4xi32, #tpu.memory_space<smem>>
    %12 = arith.sitofp %11 : i32 to f32
    %cst_5 = arith.constant 1.000000e+00 : f32
    %13 = arith.subf %cst_5, %12 : f32
    %14 = vector.broadcast %13 : f32 to vector<1x128xf32>
    %15 = arith.mulf %10, %14 : vector<1x128xf32>
    %16 = vector.broadcast %12 : f32 to vector<1x128xf32>
    %17 = arith.addf %15, %16 : vector<1x128xf32>
    %18 = arith.mulf %9, %17 : vector<1x128xf32>
    %c2 = arith.constant 2 : index
    %c0_6 = arith.constant 0 : index
    %19 = vector.load %arg2[%c2, %c0_6] : memref<4x128xf32, #tpu.memory_space<vmem>>, vector<1x128xf32>
    %c2_7 = arith.constant 2 : index
    %20 = memref.load %arg1[%c2_7] : memref<4xi32, #tpu.memory_space<smem>>
    %21 = arith.sitofp %20 : i32 to f32
    %cst_8 = arith.constant 1.000000e+00 : f32
    %22 = arith.subf %cst_8, %21 : f32
    %23 = vector.broadcast %22 : f32 to vector<1x128xf32>
    %24 = arith.mulf %19, %23 : vector<1x128xf32>
    %25 = vector.broadcast %21 : f32 to vector<1x128xf32>
    %26 = arith.addf %24, %25 : vector<1x128xf32>
    %27 = arith.mulf %18, %26 : vector<1x128xf32>
    %c3 = arith.constant 3 : index
    %c0_9 = arith.constant 0 : index
    %28 = vector.load %arg2[%c3, %c0_9] : memref<4x128xf32, #tpu.memory_space<vmem>>, vector<1x128xf32>
    %c3_10 = arith.constant 3 : index
    %29 = memref.load %arg1[%c3_10] : memref<4xi32, #tpu.memory_space<smem>>
    %30 = arith.sitofp %29 : i32 to f32
    %cst_11 = arith.constant 1.000000e+00 : f32
    %31 = arith.subf %cst_11, %30 : f32
    %32 = vector.broadcast %31 : f32 to vector<1x128xf32>
    %33 = arith.mulf %28, %32 : vector<1x128xf32>
    %34 = vector.broadcast %30 : f32 to vector<1x128xf32>
    %35 = arith.addf %33, %34 : vector<1x128xf32>
    %36 = arith.mulf %27, %35 : vector<1x128xf32>
    %c0_12 = arith.constant 0 : index
    %c0_13 = arith.constant 0 : index
    %37 = vector.load %arg3[%c0_12, %c0_13] : memref<1x128xf32, #tpu.memory_space<vmem>>, vector<1x128xf32>
    tpu.vector_store %arg3[%c0_12, %c0_13], %36 {strides = array<i32>} : memref<1x128xf32, #tpu.memory_space<vmem>>, vector<1x128xf32>,
    return
  }
  func.func @transform_0(%arg0: i32, %arg1: memref<4xi32, #tpu.memory_space<smem>>) -> (i32, i32) {
    %c0_i32 = arith.constant 0 : i32
    %c0_i32_0 = arith.constant 0 : i32
    return %c0_i32, %arg0 : i32, i32
  }
  func.func @transform_1(%arg0: i32, %arg1: memref<4xi32, #tpu.memory_space<smem>>) -> (i32, i32) {
    %c0_i32 = arith.constant 0 : i32
    %c0_i32_0 = arith.constant 0 : i32
    return %c0_i32, %arg0 : i32, i32
  }
}

</mosaic_0001>

<llo_original>
// kernel: _fused_and_prod.1
$region0: #{_fused_and_prod.1}
  #allocation0 [shape = 'u32[]', space=smem, size = 0x4, offset = 0x4, fixed_abs, tag = 'smem constant byte address 0x4 - core index']
  #allocation1 [shape = 'u32[72,128]{1,0:T(1,128)}', space=vmem, size = 0x9000, scoped, tag = 'internal scratch']
  #allocation2 [shape = 's32[1]{0}', space=sflag, size = 0x4, scoped, tag = 'scoped memory for _fused_and_prod.1']
  #allocation3 [shape = 'u8[512]{0}', space=smem, size = 0x200, scoped, tag = 'prefetched SMEM operand 0']
  %s0 = inlined_call_operand.vmem [shape: s32[4], index: 0, kind: input, shape index: {}]
  %s1 = inlined_call_operand.vmem [shape: f32[4,128], index: 1, kind: input, shape index: {}]
  %s2 = inlined_call_operand.vmem [shape: f32[1,128], index: 2, kind: output, shape index: {}]
  %s3 = sld [smem:[#allocation0]]
  $region14: #{_fused_and_prod.1} parent=0
    _
  %s5 = ssub.s32 1, %s3
  %s6 = scalar_select 0, %s5, %s3
  %s8 = sshll.u32 %s0, 4
  %s9 = int_to_ptr.vmem [resolvable:$true] %s8
  %11 = dma.vmem_to_smem %s9, 16, [#allocation3], [#allocation2]
  %13 = dma.done [#allocation2], 16
  %14 = sfence
  // Predicated region
  $region2: #{_fused_and_prod.1} parent=0 // pred_check
    _
  $region3: #{_fused_and_prod.1} parent=0 // pred_check_branch
    %16 = sbr.rel (0) target = $region5
  $region4: #{_fused_and_prod.1} parent=0 // pred_region
    _
  $region5: #{_fused_and_prod.1} parent=0 // pred_fallthru
    _
  %v17 = vld [vmem:[%s1] sm:$0x1]
  %s18 = sld [smem:[#allocation3]]
  %s19 = scvt.s32.f32 %s18
  %s20 = ssub.f32 1.0, %s19
  %v21 = vstv %s20
  %v22 = vmul.f32 %v17, %v21
  %v23 = vstv %s19
  %v24 = vadd.f32 %v22, %v23
  %v25 = vld [vmem:[%s1 + $0x1] sm:$0x1]
  %s26 = sld [smem:[#allocation3 + $0x1]]
  %s27 = scvt.s32.f32 %s26
  %s28 = ssub.f32 1.0, %s27
  %v29 = vstv %s28
  %v30 = vmul.f32 %v25, %v29
  %v31 = vstv %s27
  %v32 = vadd.f32 %v30, %v31
  %v33 = vmul.f32 %v24, %v32
  %v34 = vld [vmem:[%s1 + $0x2] sm:$0x1]
  %s35 = sld [smem:[#allocation3 + $0x2]]
  %s36 = scvt.s32.f32 %s35
  %s37 = ssub.f32 1.0, %s36
  %v38 = vstv %s37
  %v39 = vmul.f32 %v34, %v38
  %v40 = vstv %s36
  %v41 = vadd.f32 %v39, %v40
  %v42 = vmul.f32 %v33, %v41
  %v43 = vld [vmem:[%s1 + $0x3] sm:$0x1]
  %s44 = sld [smem:[#allocation3 + $0x3]]
  %s45 = scvt.s32.f32 %s44
  %s46 = ssub.f32 1.0, %s45
  %v47 = vstv %s46
  %v48 = vmul.f32 %v43, %v47
  %v49 = vstv %s45
  %v50 = vadd.f32 %v48, %v49
  %v51 = vmul.f32 %v42, %v50
  %52 = vst [vmem:[%s2] sm:$0x1] %v51
  // Predicated region
  $region6: #{_fused_and_prod.1} parent=0 // pred_check
    _
  $region7: #{_fused_and_prod.1} parent=0 // pred_check_branch
    %54 = sbr.rel (0) target = $region9
  $region8: #{_fused_and_prod.1} parent=0 // pred_region
    _
  $region9: #{_fused_and_prod.1} parent=0 // pred_fallthru
    _
  // Predicated region
  $region10: #{_fused_and_prod.1} parent=0 // pred_check
    _
  $region11: #{_fused_and_prod.1} parent=0 // pred_check_branch
    %56 = sbr.rel (0) target = $region13
  $region12: #{_fused_and_prod.1} parent=0 // pred_region
    _
  $region13: #{_fused_and_prod.1} parent=0 // pred_fallthru
    _

</llo_original>
